<compile_context>
chip_gen: v6e
topology: v6e:2x2x1
jax: 0.10.0
libtpu: 0.0.40
codegen_flags: <defaults>
</compile_context>

<pallas_src>
import jax
import jax.numpy as jnp
from jax.experimental import pallas as pl
from jax.experimental.pallas import tpu as pltpu

LN_EPS = 1e-5  # torch.nn.LayerNorm default


# ---------------------------------------------------------------------------
# Kernels
# ---------------------------------------------------------------------------

def _epilogue(y, x_res, p_ref, o_dtype):
    """Swish -> (eval dropout = identity) -> residual -> LayerNorm, all in f32."""
    y = y * jax.nn.sigmoid(y)                       # Swish (exp on EUP slot)
    # TODO(synk): training-mode stochastic dropout mask (pltpu.prng_*) omitted;
    # eval-mode dropout is the identity.
    y = x_res.astype(jnp.float32) + y               # residual add
    d = y.shape[-1]
    inv_d = 1.0 / d
    mean = jnp.sum(y, axis=-1, keepdims=True) * inv_d
    msq = jnp.sum(y * y, axis=-1, keepdims=True) * inv_d
    var = msq - mean * mean                          # one-pass population variance
    y = (y - mean) * jax.lax.rsqrt(var + LN_EPS)
    y = y * p_ref[1:2, :] + p_ref[2:3, :]            # gamma / beta (f32, resident)
    return y.astype(o_dtype)


def _resblock_kernel(x_ref, w_ref, p_ref, o_ref):
    """Resident-W path: whole (D, D) weight stays in VMEM across row blocks."""
    x = x_ref[...]                                                   # (TN, D) native dtype
    y = jnp.dot(x.astype(w_ref.dtype), w_ref[...],
                preferred_element_type=jnp.float32)                  # MXU, f32 acc
    y = y + p_ref[0:1, :]                                            # bias (f32)
    o_ref[...] = _epilogue(y, x, p_ref, o_ref.dtype)


def _resblock_k_kernel(xk_ref, w_ref, xres_ref, p_ref, o_ref, acc_ref):
    """Large-D path: W streamed as (TK, D) panels along a reduction grid axis."""
    k = pl.program_id(1)

    @pl.when(k == 0)
    def _():
        acc_ref[...] = jnp.zeros_like(acc_ref)

    acc_ref[...] += jnp.dot(xk_ref[...].astype(w_ref.dtype), w_ref[...],
                            preferred_element_type=jnp.float32)

    @pl.when(k == pl.num_programs(1) - 1)
    def _():
        y = acc_ref[...] + p_ref[0:1, :]
        o_ref[...] = _epilogue(y, xres_ref[...], p_ref, o_ref.dtype)


# ---------------------------------------------------------------------------
# Tile sizing
# ---------------------------------------------------------------------------

def _vmem_limit_bytes():
    try:
        cap = pltpu.get_tpu_info().vmem_capacity_bytes
    except Exception:
        cap = 64 * 1024 * 1024
    # Treat the limit as per-TensorCore: v7x has 2 TCs with 64 MiB each, so clamp
    # the chip-level figure.  (Conservative but safe on v5e/v6e.)
    return int(min(cap, 64 * 1024 * 1024))


def _row_align(dtype):
    s = jnp.dtype(dtype).itemsize
    if s >= 4:
        return 8
    return 16 if s == 2 else 32   # bf16 packs [16,128] per vreg; int8/fp8 [32,128]


def _round_up(v, a):
    return ((v + a - 1) // a) * a


def _round_down(v, a):
    return (v // a) * a


def _pick_block_rows(N, D, x_dtype, mm_dtype, budget):
    """Largest row tile s.t. double-buffered resident W + double-buffered x/out
    tiles + ~5 live f32 [TN, D] temporaries fit the per-TC VMEM budget.
    Returns None when W does not fit resident (-> K-tiled path)."""
    wb = jnp.dtype(mm_dtype).itemsize
    xb = jnp.dtype(x_dtype).itemsize
    align = _row_align(x_dtype)
    w_bytes = 2 * D * D * wb              # Pallas double-buffers even constant-index inputs
    param_bytes = 2 * 3 * D * 4
    per_row = D * (2 * xb + 2 * xb + 5 * 4)
    avail = budget - w_bytes - param_bytes
    if avail < per_row * align:
        return None
    rows = avail // per_row
    rows = min(rows, 512, _round_up(N, align))
    if N > 2 * align:                     # guarantee >=2 row blocks (v7x megacore)
        rows = min(rows, _round_up((N + 1) // 2, align))
    rows = _round_down(rows, 128) if rows >= 128 else _round_down(rows, align)
    return int(max(rows, align))


def _pick_k_tiles(N, D, x_dtype, mm_dtype, budget):
    """Row tile + K panel size for the streamed-W path (requires D % 128 == 0,
    and TK must divide D so no garbage enters the accumulation)."""
    assert D % 128 == 0, "K-tiled path requires the feature dim to be a multiple of 128"
    wb = jnp.dtype(mm_dtype).itemsize
    xb = jnp.dtype(x_dtype).itemsize
    align = _row_align(x_dtype)

    tk = 128
    per_row = D * 4 + 2 * D * xb + 2 * D * xb + 2 * tk * xb + 4 * D * 4
    avail = budget - 2 * tk * D * wb - 2 * 3 * D * 4
    rows = max(align, min(avail // per_row, 256, _round_up(N, align)))
    if N > 2 * align:
        rows = min(rows, _round_up((N + 1) // 2, align))
    rows = _round_down(rows, 128) if rows >= 128 else _round_down(rows, align)
    rows = int(max(rows, align))

    # Grow TK with whatever budget is left (fewer, larger W-panel DMAs).
    fixed = 2 * 3 * D * 4 + rows * (D * 4 + 4 * D * xb + 4 * D * 4)
    per_k = 2 * D * wb + 2 * rows * xb
    leftover = budget - fixed
    tk = max(128, _round_down(max(leftover // per_k, 128), 128))
    while D % tk:
        tk -= 128
    return rows, int(tk)


# ---------------------------------------------------------------------------
# Wrapper
# ---------------------------------------------------------------------------

def resblock_forward(x, w, b, gamma, beta, *, block_rows=None, block_k=None,
                     force_k_tiled=False, matmul_dtype=jnp.bfloat16):
    """x: [N, D]; w: [D, D] (input-major, i.e. transpose of the torch weight);
    b / gamma / beta: [D].  Eval-mode forward (dropout = identity).
    D should be a multiple of 128 for lane-dense stores (required for the K-tiled path)."""
    N, D = x.shape
    assert w.shape == (D, D), "residual add requires input_dim == output_dim"

    limit = _vmem_limit_bytes()
    budget = int(limit * 0.7)             # headroom for Mosaic internal scratch

    mm_dtype = matmul_dtype if matmul_dtype is not None else w.dtype
    w_mm = w.astype(mm_dtype)             # cast once in the wrapper (bf16 MXU operands)
    params = jnp.stack([b, gamma, beta]).astype(jnp.float32)   # (3, D) resident f32

    cparams = lambda sem: pltpu.CompilerParams(
        dimension_semantics=sem, vmem_limit_bytes=limit)

    if not force_k_tiled:
        TN = block_rows if block_rows is not None else _pick_block_rows(
            N, D, x.dtype, mm_dtype, budget)
    else:
        TN = None

    if TN is not None:
        # ------------------- resident-W path -------------------
        return pl.pallas_call(
            _resblock_kernel,
            out_shape=jax.ShapeDtypeStruct((N, D), x.dtype),
            grid_spec=pltpu.PrefetchScalarGridSpec(
                num_scalar_prefetch=0,
                grid=(pl.cdiv(N, TN),),
                in_specs=[
                    pl.BlockSpec((TN, D), lambda i: (i, 0)),   # x: streamed row tiles
                    pl.BlockSpec((D, D), lambda i: (0, 0)),    # W: resident
                    pl.BlockSpec((3, D), lambda i: (0, 0)),    # bias/gamma/beta (f32)
                ],
                out_specs=pl.BlockSpec((TN, D), lambda i: (i, 0)),
            ),
            compiler_params=cparams(("parallel",)),
        )(x, w_mm, params)

    # ------------------- K-tiled (large-D) path -------------------
    if block_rows is None or block_k is None:
        auto_rows, auto_tk = _pick_k_tiles(N, D, x.dtype, mm_dtype, budget)
    TN = block_rows if block_rows is not None else auto_rows
    TK = block_k if block_k is not None else auto_tk
    assert D % TK == 0 and TK % 128 == 0, "TK must divide D and be a multiple of 128"

    return pl.pallas_call(
        _resblock_k_kernel,
        out_shape=jax.ShapeDtypeStruct((N, D), x.dtype),
        grid_spec=pltpu.PrefetchScalarGridSpec(
            num_scalar_prefetch=0,
            grid=(pl.cdiv(N, TN), D // TK),
            in_specs=[
                pl.BlockSpec((TN, TK), lambda i, k: (i, k)),   # x K-slice (matmul operand)
                pl.BlockSpec((TK, D), lambda i, k: (k, 0)),    # W K-panel (streamed)
                pl.BlockSpec((TN, D), lambda i, k: (i, 0)),    # x full row (residual)
                pl.BlockSpec((3, D), lambda i, k: (0, 0)),     # bias/gamma/beta (f32)
            ],
            out_specs=pl.BlockSpec((TN, D), lambda i, k: (i, 0)),
            scratch_shapes=[pltpu.VMEM((TN, D), jnp.float32)],  # f32 accumulator
        ),
        compiler_params=cparams(("parallel", "arbitrary")),
    )(x, w_mm, x, params)


# ---------------------------------------------------------------------------
# Pure-JAX reference (eval-mode dropout = identity), matmul dtype matched.
# ---------------------------------------------------------------------------

def resblock_reference(x, w, b, gamma, beta, matmul_dtype=jnp.bfloat16):
    xm = x.astype(matmul_dtype) if matmul_dtype is not None else x
    wm = w.astype(matmul_dtype) if matmul_dtype is not None else w
    y = jnp.dot(xm, wm, preferred_element_type=jnp.float32) + b.astype(jnp.float32)
    y = y * jax.nn.sigmoid(y)
    y = x.astype(jnp.float32) + y
    mu = y.mean(-1, keepdims=True)
    var = ((y - mu) ** 2).mean(-1, keepdims=True)
    y = (y - mu) * jax.lax.rsqrt(var + LN_EPS) * gamma + beta
    return y.astype(x.dtype)


if __name__ == "__main__":
    key = jax.random.PRNGKey(0)
    k_x, k_w, k_b, k_x2, k_w2 = jax.random.split(key, 5)

    # --- test 1: resident-W path, ragged row count (N % TN != 0, no padding) ---
    batch, dim = 50, 128
    x = jax.random.normal(k_x, (batch, dim), dtype=jnp.float32)
    w = jax.random.normal(k_w, (dim, dim), dtype=jnp.float32) * (1.0 / jnp.sqrt(dim))
    b = jax.random.normal(k_b, (dim,), dtype=jnp.float32) * 0.01
    gamma = jnp.ones((dim,), dtype=jnp.float32)
    beta = jnp.zeros((dim,), dtype=jnp.float32)

    out = jax.block_until_ready(resblock_forward(x, w, b, gamma, beta))
    ref = resblock_reference(x, w, b, gamma, beta)
    assert out.shape == ref.shape
    err = jnp.max(jnp.abs(out - ref))
    assert jnp.allclose(out, ref, atol=2e-3, rtol=2e-3), f"resident-W path max err {err}"

    # --- test 2: K-tiled (large-D) path, forced at small shapes ---
    batch2, dim2 = 40, 256
    x2 = jax.random.normal(k_x2, (batch2, dim2), dtype=jnp.float32)
    w2 = jax.random.normal(k_w2, (dim2, dim2), dtype=jnp.float32) * (1.0 / jnp.sqrt(dim2))
    b2 = jnp.full((dim2,), 0.02, dtype=jnp.float32)
    gamma2 = jnp.full((dim2,), 1.5, dtype=jnp.float32)
    beta2 = jnp.full((dim2,), 0.25, dtype=jnp.float32)

    out2 = jax.block_until_ready(
        resblock_forward(x2, w2, b2, gamma2, beta2,
                         force_k_tiled=True, block_rows=16, block_k=128))
    ref2 = resblock_reference(x2, w2, b2, gamma2, beta2)
    err2 = jnp.max(jnp.abs(out2 - ref2))
    assert jnp.allclose(out2, ref2, atol=2e-3, rtol=2e-3), f"K-tiled path max err {err2}"

    print("KERNEL_OK")
</pallas_src>

<mosaic_0001>
module attributes {stable_mosaic.version = 11 : i64} {
  func.func @_resblock_kernel(%arg0: i32, %arg1: memref<32x128xf32, #tpu.memory_space<vmem>>, %arg2: memref<128x128xbf16, #tpu.memory_space<vmem>>, %arg3: memref<3x128xf32, #tpu.memory_space<vmem>>, %arg4: memref<32x128xf32, #tpu.memory_space<vmem>>) attributes {dimension_semantics = [#tpu.dimension_semantics<parallel>], iteration_bounds = array<i64: 2>, scalar_prefetch = 0 : i64, scratch_operands = 0 : i64, tpu.core_type = #tpu.core_type<tc>, window_params = [{transform_indices = @transform_0, window_bounds = array<i64: 32, 128>}, {pipeline_mode = #tpu.pipeline_mode<synchronous>, transform_indices = @transform_1, window_bounds = array<i64: 128, 128>}, {pipeline_mode = #tpu.pipeline_mode<synchronous>, transform_indices = @transform_2, window_bounds = array<i64: 3, 128>}, {transform_indices = @transform_3, window_bounds = array<i64: 32, 128>}]} {
    %c0 = arith.constant 0 : index
    %c0_0 = arith.constant 0 : index
    %0 = vector.load %arg1[%c0, %c0_0] : memref<32x128xf32, #tpu.memory_space<vmem>>, vector<32x128xf32>
    %1 = arith.truncf %0 : vector<32x128xf32> to vector<32x128xbf16>
    %c0_1 = arith.constant 0 : index
    %c0_2 = arith.constant 0 : index
    %2 = vector.load %arg2[%c0_1, %c0_2] : memref<128x128xbf16, #tpu.memory_space<vmem>>, vector<128x128xbf16>
    %cst = arith.constant dense<0.000000e+00> : vector<32x128xf32>
    %3 = tpu.matmul %1, %2, %cst {dimension_numbers = #tpu.dot_dimension_numbers<[1], [0], [0], [1], [0, 0, 1, 1], [], []>} : vector<32x128xbf16>, vector<128x128xbf16>, vector<32x128xf32> -> vector<32x128xf32>
    %c0_3 = arith.constant 0 : index
    %c0_4 = arith.constant 0 : index
    %4 = vector.load %arg3[%c0_3, %c0_4] : memref<3x128xf32, #tpu.memory_space<vmem>>, vector<1x128xf32>
    %5 = vector.broadcast %4 : vector<1x128xf32> to vector<32x128xf32>
    %6 = arith.addf %3, %5 : vector<32x128xf32>
    %7 = arith.negf %6 : vector<32x128xf32>
    %8 = math.exp %7 : vector<32x128xf32>
    %cst_5 = arith.constant 1.000000e+00 : f32
    %9 = vector.broadcast %cst_5 : f32 to vector<32x128xf32>
    %10 = arith.addf %9, %8 : vector<32x128xf32>
    %11 = arith.divf %9, %10 : vector<32x128xf32>
    %12 = arith.mulf %6, %11 : vector<32x128xf32>
    %13 = arith.addf %0, %12 : vector<32x128xf32>
    %cst_6 = arith.constant dense<0.000000e+00> : vector<32xf32>
    %14 = vector.multi_reduction <add>, %13, %cst_6 [1] : vector<32x128xf32> to vector<32xf32>
    %15 = vector.shape_cast %14 : vector<32xf32> to vector<32x1xf32>
    %cst_7 = arith.constant 7.812500e-03 : f32
    %16 = vector.broadcast %cst_7 : f32 to vector<32x1xf32>
    %17 = arith.mulf %15, %16 : vector<32x1xf32>
    %18 = arith.mulf %13, %13 : vector<32x128xf32>
    %cst_8 = arith.constant dense<0.000000e+00> : vector<32xf32>
    %19 = vector.multi_reduction <add>, %18, %cst_8 [1] : vector<32x128xf32> to vector<32xf32>
    %20 = vector.shape_cast %19 : vector<32xf32> to vector<32x1xf32>
    %cst_9 = arith.constant 7.812500e-03 : f32
    %21 = vector.broadcast %cst_9 : f32 to vector<32x1xf32>
    %22 = arith.mulf %20, %21 : vector<32x1xf32>
    %23 = arith.mulf %17, %17 : vector<32x1xf32>
    %24 = arith.subf %22, %23 : vector<32x1xf32>
    %25 = vector.broadcast %17 : vector<32x1xf32> to vector<32x128xf32>
    %26 = arith.subf %13, %25 : vector<32x128xf32>
    %cst_10 = arith.constant 9.99999974E-6 : f32
    %27 = vector.broadcast %cst_10 : f32 to vector<32x1xf32>
    %28 = arith.addf %24, %27 : vector<32x1xf32>
    %29 = math.rsqrt %28 : vector<32x1xf32>
    %30 = vector.broadcast %29 : vector<32x1xf32> to vector<32x128xf32>
    %31 = arith.mulf %26, %30 : vector<32x128xf32>
    %c1 = arith.constant 1 : index
    %c0_11 = arith.constant 0 : index
    %32 = vector.load %arg3[%c1, %c0_11] : memref<3x128xf32, #tpu.memory_space<vmem>>, vector<1x128xf32>
    %33 = vector.broadcast %32 : vector<1x128xf32> to vector<32x128xf32>
    %34 = arith.mulf %31, %33 : vector<32x128xf32>
    %c2 = arith.constant 2 : index
    %c0_12 = arith.constant 0 : index
    %35 = vector.load %arg3[%c2, %c0_12] : memref<3x128xf32, #tpu.memory_space<vmem>>, vector<1x128xf32>
    %36 = vector.broadcast %35 : vector<1x128xf32> to vector<32x128xf32>
    %37 = arith.addf %34, %36 : vector<32x128xf32>
    %c0_13 = arith.constant 0 : index
    %c0_14 = arith.constant 0 : index
    %38 = vector.load %arg4[%c0_13, %c0_14] : memref<32x128xf32, #tpu.memory_space<vmem>>, vector<32x128xf32>
    tpu.vector_store %arg4[%c0_13, %c0_14], %37 {strides = array<i32>} : memref<32x128xf32, #tpu.memory_space<vmem>>, vector<32x128xf32>,
    return
  }
  func.func @transform_0(%arg0: i32) -> (i32, i32) {
    %c0_i32 = arith.constant 0 : i32
    %c0_i32_0 = arith.constant 0 : i32
    return %arg0, %c0_i32 : i32, i32
  }
  func.func @transform_1(%arg0: i32) -> (i32, i32) {
    %c0_i32 = arith.constant 0 : i32
    %c0_i32_0 = arith.constant 0 : i32
    %c0_i32_1 = arith.constant 0 : i32
    return %c0_i32, %c0_i32_0 : i32, i32
  }
  func.func @transform_2(%arg0: i32) -> (i32, i32) {
    %c0_i32 = arith.constant 0 : i32
    %c0_i32_0 = arith.constant 0 : i32
    %c0_i32_1 = arith.constant 0 : i32
    return %c0_i32, %c0_i32_0 : i32, i32
  }
  func.func @transform_3(%arg0: i32) -> (i32, i32) {
    %c0_i32 = arith.constant 0 : i32
    %c0_i32_0 = arith.constant 0 : i32
    return %arg0, %c0_i32 : i32, i32
  }
}

</mosaic_0001>

<llo_original>
// kernel: tpu_custom_call.1
$region0: #{tpu_custom_call.1}
  #allocation0 [shape = 'u32[]', space=smem, size = 0x4, offset = 0x4, fixed_abs, tag = 'smem constant byte address 0x4 - core index']
  #allocation1 [shape = 'u32[144,128]{1,0:T(1,128)}', space=vmem, size = 0x12000, scoped, tag = 'internal scratch']
  %s0 = inlined_call_operand.hbm [shape: f32[50,128], index: 0, kind: input, shape index: {}]
  %s1 = inlined_call_operand.hbm [shape: bf16[128,128], index: 1, kind: input, shape index: {}]
  %s2 = inlined_call_operand.hbm [shape: f32[3,128], index: 2, kind: input, shape index: {}]
  %s3 = inlined_call_operand.hbm [shape: f32[50,128], index: 3, kind: output, shape index: {}]
  %s4 = sld [smem:[#allocation0]]
  $region57: #{tpu_custom_call.1} parent=0
    _
  %s6 = ssub.s32 1, %s4
  %s7 = scalar_select 0, %s6, %s4
  $region1: #{tpu_custom_call.1} parent=0
    #allocation2 [shape = 'u8[32768]{0}', space=vmem, size = 0x8000, scoped, tag = 'input window, operand 0']
    #allocation3 [shape = 's32[2]{0}', space=sflag, size = 0x8, scoped, tag = 'scoped memory for tpu_custom_call.1']
    #allocation4 [shape = 's32[2]{0}', space=sflag, size = 0x8, scoped, tag = 'scoped memory for tpu_custom_call.1']
    #allocation5 [shape = 'u8[32768]{0}', space=vmem, size = 0x8000, scoped, tag = 'input window, operand 1, single buffered']
    #allocation6 [shape = 's32[1]{0}', space=sflag, size = 0x4, scoped, tag = 'scoped memory for tpu_custom_call.1']
    #allocation7 [shape = 'u8[2048]{0}', space=vmem, size = 0x800, scoped, tag = 'input window, operand 2, single buffered']
    #allocation8 [shape = 'u8[32768]{0}', space=vmem, size = 0x8000, scoped, tag = 'output window, operand 0']
    %8 = vsyncpa [#allocation3], 0
    %s9 = scalar_lea.sflag [#allocation3], 1
    %10 = vsyncpa %s9, 0
    %11 = vsyncpa [#allocation6], 0
    %12 = vsyncpa [#allocation4], 0
    %s13 = scalar_lea.sflag [#allocation4], 1
    %14 = vsyncpa %s13, 0
    loop: start=0, step=1, limit=4
    $region2: #{tpu_custom_call.1} parent=1 // loop_pre_header
      _
    $region3: #{tpu_custom_call.1} parent=1 // loop_header
      %s16 = sphi 0, %s20
      %p17 = scmp.ge.s32.totalorder %s16, 4
      %s26 = sphi 0, %s28
      %s29 = sphi 0, %s26
      %s30 = sphi 0, %s29
      %s46 = sphi 0, %s30
      %s50 = sphi 0, %s50
      %s52 = sphi 0, %s50
      %s53 = sphi 0, %s52
      %s67 = sphi 0, %s53
      %s71 = sphi 0, %s71
      %s73 = sphi 0, %s71
      %s74 = sphi 0, %s73
      %s88 = sphi 0, %s74
      %s94 = sphi 0, %s96
      %s97 = sphi 0, %s94
      %s98 = sphi 0, %s97
      %s114 = sphi 0, %s98
    $region4: #{tpu_custom_call.1} parent=1 // loop_header_branch
      %19 = sbr.rel (%p17) target = $region8
    $region5: #{tpu_custom_call.1} parent=1 // loop_body
      %s21 = ssub.s32 %s16, 1
      %s22 = ssub.s32 %s16, 2
      %s23 = sadd.s32 %s16, 1
      %s24 = ssub.s32 %s16, %s23
      %p25 = scmp.eq.s32.totalorder %s24, 0
      %s27 = sadd.s32 %s26, 1
      %s28 = scalar_select %p25, %s26, %s27
      %p31 = pneg %p25
      %p32 = scmp.eq.s32.totalorder %s16, 1
      %p33 = por %p31, %p32
      %p34 = scmp.ne.s32.totalorder %s26, %s29
      %p35 = scmp.eq.s32.totalorder %s16, 0
      %p36 = por %p34, %p35
      %p37 = scmp.ne.s32.totalorder %s26, %s29
      %p38 = scmp.eq.s32.totalorder %s21, 1
      %p39 = por %p37, %p38
      %p40 = scmp.ne.s32.totalorder %s29, %s30
      %p41 = scmp.eq.s32.totalorder %s21, 0
      %p42 = por %p40, %p41
      %p43 = scmp.ne.s32.totalorder %s29, %s30
      %p44 = scmp.eq.s32.totalorder %s22, 1
      %p45 = por %p43, %p44
      %p47 = scmp.ne.s32.totalorder %s30, %s46
      %p48 = scmp.eq.s32.totalorder %s22, 0
      %p49 = por %p47, %p48
      %s51 = sadd.s32 %s50, 1
      %p54 = scmp.eq.s32.totalorder %s16, 1
      %p55 = scmp.ne.s32.totalorder %s50, %s52
      %p56 = scmp.eq.s32.totalorder %s16, 0
      %p57 = por %p55, %p56
      %p58 = scmp.ne.s32.totalorder %s50, %s52
      %p59 = scmp.eq.s32.totalorder %s21, 1
      %p60 = por %p58, %p59
      %p61 = scmp.ne.s32.totalorder %s52, %s53
      %p62 = scmp.eq.s32.totalorder %s21, 0
      %p63 = por %p61, %p62
      %p64 = scmp.ne.s32.totalorder %s52, %s53
      %p65 = scmp.eq.s32.totalorder %s22, 1
      %p66 = por %p64, %p65
      %p68 = scmp.ne.s32.totalorder %s53, %s67
      %p69 = scmp.eq.s32.totalorder %s22, 0
      %p70 = por %p68, %p69
      %s72 = sadd.s32 %s71, 1
      %p75 = scmp.eq.s32.totalorder %s16, 1
      %p76 = scmp.ne.s32.totalorder %s71, %s73
      %p77 = scmp.eq.s32.totalorder %s16, 0
      %p78 = por %p76, %p77
      %p79 = scmp.ne.s32.totalorder %s71, %s73
      %p80 = scmp.eq.s32.totalorder %s21, 1
      %p81 = por %p79, %p80
      %p82 = scmp.ne.s32.totalorder %s73, %s74
      %p83 = scmp.eq.s32.totalorder %s21, 0
      %p84 = por %p82, %p83
      %p85 = scmp.ne.s32.totalorder %s73, %s74
      %p86 = scmp.eq.s32.totalorder %s22, 1
      %p87 = por %p85, %p86
      %p89 = scmp.ne.s32.totalorder %s74, %s88
      %p90 = scmp.eq.s32.totalorder %s22, 0
      %p91 = por %p89, %p90
      %s92 = ssub.s32 %s16, %s23
      %p93 = scmp.eq.s32.totalorder %s92, 0
      %s95 = sadd.s32 %s94, 1
      %s96 = scalar_select %p93, %s94, %s95
      %p99 = pneg %p93
      %p100 = scmp.eq.s32.totalorder %s16, 1
      %p101 = por %p99, %p100
      %p102 = scmp.ne.s32.totalorder %s94, %s97
      %p103 = scmp.eq.s32.totalorder %s16, 0
      %p104 = por %p102, %p103
      %p105 = scmp.ne.s32.totalorder %s94, %s97
      %p106 = scmp.eq.s32.totalorder %s21, 1
      %p107 = por %p105, %p106
      %p108 = scmp.ne.s32.totalorder %s97, %s98
      %p109 = scmp.eq.s32.totalorder %s21, 0
      %p110 = por %p108, %p109
      %p111 = scmp.ne.s32.totalorder %s97, %s98
      %p112 = scmp.eq.s32.totalorder %s22, 1
      %p113 = por %p111, %p112
      %p115 = scmp.ne.s32.totalorder %s98, %s114
      %p116 = scmp.eq.s32.totalorder %s22, 0
      %p117 = por %p115, %p116
      %p118 = scmp.le.s32.totalorder 1, %s16
      %p119 = scmp.lt.s32.totalorder %s16, 3
      %p120 = pnand %p118, %p119
      %p121 = pneg %p120
      // Predicated region
      $region9: #{tpu_custom_call.1} parent=5 // pred_check
        _
      $region10: #{tpu_custom_call.1} parent=5 // pred_check_branch
        %123 = sbr.rel (%p120) target = $region12
      $region11: #{tpu_custom_call.1} parent=5 // pred_region
        %s124 = ssub.s32 %s16, 1
        // Predicated region
        $region13: #{tpu_custom_call.1} parent=11 // pred_check
          %p125 = pneg %p63
        $region14: #{tpu_custom_call.1} parent=11 // pred_check_branch
          %127 = sbr.rel (%p125) target = $region16
        $region15: #{tpu_custom_call.1} parent=11 // pred_region
          %s129 = ssub.s32 1024, 1024
          %130 = vsyncadd [#allocation6], %s129
          %s131 = sshll.u32 [#allocation5], 4
          %s132 = int_to_ptr.vmem [resolvable:$true] %s131
          %137 = dma.hbm_to_vmem [thread:$0]  %s1, 1024, %s132, [#allocation6], 64, 64, 4
        $region16: #{tpu_custom_call.1} parent=11 // pred_fallthru
          _
        // Predicated region
        $region17: #{tpu_custom_call.1} parent=11 // pred_check
          %p138 = pneg %p84
        $region18: #{tpu_custom_call.1} parent=11 // pred_check_branch
          %140 = sbr.rel (%p138) target = $region20
        $region19: #{tpu_custom_call.1} parent=11 // pred_region
          %s142 = ssub.s32 64, 64
          %143 = vsyncadd [#allocation6], %s142
          %s145 = sshll.u32 [#allocation7], 4
          %s146 = int_to_ptr.vmem [resolvable:$true] %s145
          %148 = dma.hbm_to_vmem [thread:$0]  %s2, 64, %s146, [#allocation6]
        $region20: #{tpu_custom_call.1} parent=11 // pred_fallthru
          _
      $region12: #{tpu_custom_call.1} parent=5 // pred_fallthru
        _
      %p149 = scmp.lt.s32.totalorder %s16, 2
      // Predicated region
      $region21: #{tpu_custom_call.1} parent=5 // pred_check
        %p150 = pneg %p149
      $region22: #{tpu_custom_call.1} parent=5 // pred_check_branch
        %152 = sbr.rel (%p150) target = $region24
      $region23: #{tpu_custom_call.1} parent=5 // pred_region
        // Predicated region
        $region25: #{tpu_custom_call.1} parent=23 // pred_check
          %p153 = pneg %p36
        $region26: #{tpu_custom_call.1} parent=23 // pred_check_branch
          %155 = sbr.rel (%p153) target = $region28
        $region27: #{tpu_custom_call.1} parent=23 // pred_region
          %s156 = sand.u32 %s26, 1
          %s157 = scalar_lea.sflag [#allocation3], %s156
          %s158 = sand.u32 %s26, 1
          %s159 = smul.addr %s158, 32
          %s160 = scalar_lea.vmem [#allocation2], %s159
          %s161 = smul.u32 4, %s16
          %s162 = ssub.s32 7, %s161
          %p163 = scmp.lt.s32.totalorder %s162, 4
          %s164 = scalar_select %p163, %s162, 4
          %s165 = smul.u32 128, %s164
          %s167 = ssub.s32 512, %s165
          %168 = vsyncadd %s157, %s167
          %p169 = scmp.ne.s32.totalorder 0, %s165
          %s170 = smul.addr %s161, 128
          %s171 = scalar_lea.hbm %s0, %s170
          %s172 = smul.u32 8, %s164
          %s173 = sshll.u32 %s160, 4
          %s174 = int_to_ptr.vmem [resolvable:$true] %s173
          %s175 = sshll.u32 %s172, 4
          %179 = dma.hbm_to_vmem [thread:$0]  (%p169), %s171, %s175, %s174, %s157, 128, 128, 8
        $region28: #{tpu_custom_call.1} parent=23 // pred_fallthru
          _
      $region24: #{tpu_custom_call.1} parent=5 // pred_fallthru
        _
      %p180 = scmp.le.s32.totalorder 1, %s16
      %p181 = scmp.lt.s32.totalorder %s16, 3
      %p182 = pnand %p180, %p181
      %p183 = pneg %p182
      // Predicated region
      $region29: #{tpu_custom_call.1} parent=5 // pred_check
        _
      $region30: #{tpu_custom_call.1} parent=5 // pred_check_branch
        %185 = sbr.rel (%p182) target = $region32
      $region31: #{tpu_custom_call.1} parent=5 // pred_region
        %s186 = ssub.s32 %s16, 1
        %s187 = sand.u32 %s29, 1
        %s188 = scalar_lea.sflag [#allocation3], %s187
        %s189 = sand.u32 %s29, 1
        %s190 = smul.addr %s189, 32
        %s191 = scalar_lea.vmem [#allocation2], %s190
        // Predicated region
        $region33: #{tpu_custom_call.1} parent=31 // pred_check
          %p192 = pneg %p42
        $region34: #{tpu_custom_call.1} parent=31 // pred_check_branch
          %194 = sbr.rel (%p192) target = $region36
        $region35: #{tpu_custom_call.1} parent=31 // pred_region
          %195 = dma.done %s188, 512
        $region36: #{tpu_custom_call.1} parent=31 // pred_fallthru
          _
        // Predicated region
        $region37: #{tpu_custom_call.1} parent=31 // pred_check
          %p196 = pneg %p63
        $region38: #{tpu_custom_call.1} parent=31 // pred_check_branch
          %198 = sbr.rel (%p196) target = $region40
        $region39: #{tpu_custom_call.1} parent=31 // pred_region
          %199 = dma.done [#allocation6], 1024
        $region40: #{tpu_custom_call.1} parent=31 // pred_fallthru
          _
        // Predicated region
        $region41: #{tpu_custom_call.1} parent=31 // pred_check
          %p200 = pneg %p84
        $region42: #{tpu_custom_call.1} parent=31 // pred_check_branch
          %202 = sbr.rel (%p200) target = $region44
        $region43: #{tpu_custom_call.1} parent=31 // pred_region
          %203 = dma.done [#allocation6], 64
        $region44: #{tpu_custom_call.1} parent=31 // pred_fallthru
          _
        %s204 = sand.u32 %s29, 1
        %s205 = scalar_lea.sflag [#allocation3], %s204
        %s206 = sand.u32 %s29, 1
        %s207 = smul.addr %s206, 32
        %s208 = scalar_lea.vmem [#allocation2], %s207
        %p209 = pneg %p42
        %p210 = pneg %p39
        %p211 = pneg %p63
        %p212 = pneg %p60
        %p213 = pneg %p84
        %p214 = pneg %p81
        %p215 = pneg %p110
        %p216 = pneg %p107
        %s217 = sand.u32 %s97, 1
        %s218 = scalar_lea.sflag [#allocation4], %s217
        %s219 = sand.u32 %s97, 1
        %s220 = smul.addr %s219, 32
        %s221 = scalar_lea.vmem [#allocation8], %s220
        %s222 = smul.u32 4, %s21
        %s223 = ssub.s32 7, %s222
        %p224 = scmp.lt.s32.totalorder %s223, 4
        %s225 = scalar_select %p224, %s223, 4
        %s226 = smul.u32 128, %s225
        %s227 = smul.u32 4, %s21
        %s228 = ssub.s32 7, %s227
        %p229 = scmp.lt.s32.totalorder %s228, 4
        %s230 = scalar_select %p229, %s228, 4
        %s231 = smul.u32 128, %s230
        %v233 = vld [vmem:[%s191] sm:$0xff]
        %v234 = vld [vmem:[%s191 + $0x8] sm:$0xff]
        %v235 = vld [vmem:[%s191 + $0x10] sm:$0xff]
        %v236 = vld [vmem:[%s191 + $0x18] sm:$0xff]
        %v237 = vpack.c.bf16 %v234, %v233
        %v238 = vpack.c.bf16 %v236, %v235
        %v239 = vld [vmem:[#allocation5] sm:$0xf]
        %v240 = vld [vmem:[#allocation5 + $0x4] sm:$0xf]
        %v241 = vld [vmem:[#allocation5 + $0x8] sm:$0xf]
        %v242 = vld [vmem:[#allocation5 + $0xc] sm:$0xf]
        %v243 = vld [vmem:[#allocation5 + $0x10] sm:$0xf]
        %v244 = vld [vmem:[#allocation5 + $0x14] sm:$0xf]
        %v245 = vld [vmem:[#allocation5 + $0x18] sm:$0xf]
        %v246 = vld [vmem:[#allocation5 + $0x1c] sm:$0xf]
        %v247 = vld [vmem:[#allocation5 + $0x20] sm:$0xf]
        %v248 = vld [vmem:[#allocation5 + $0x24] sm:$0xf]
        %v249 = vld [vmem:[#allocation5 + $0x28] sm:$0xf]
        %v250 = vld [vmem:[#allocation5 + $0x2c] sm:$0xf]
        %v251 = vld [vmem:[#allocation5 + $0x30] sm:$0xf]
        %v252 = vld [vmem:[#allocation5 + $0x34] sm:$0xf]
        %v253 = vld [vmem:[#allocation5 + $0x38] sm:$0xf]
        %v254 = vld [vmem:[#allocation5 + $0x3c] sm:$0xf]
        %v255 = vld [vmem:[#allocation7] sm:$0x1]
        %v256 = vlaneseq
        %v257 = vshrl.u32 %v256, 7
        %v258 = vsub.s32 0, %v257
        %v259 = vrot.slane %v255, %v258
        %v276 = vunpack.c.l.b16 %v239
        %v277 = vunpack.c.l.b16 %v240
        %v278 = vunpack.c.l.b16 %v241
        %v279 = vunpack.c.l.b16 %v242
        %v280 = vunpack.c.l.b16 %v243
        %v281 = vunpack.c.l.b16 %v244
        %v282 = vunpack.c.l.b16 %v245
        %v283 = vunpack.c.l.b16 %v246
        %v284 = vunpack.c.l.b16 %v247
        %v285 = vunpack.c.l.b16 %v248
        %v286 = vunpack.c.l.b16 %v249
        %v287 = vunpack.c.l.b16 %v250
        %v288 = vunpack.c.l.b16 %v251
        %v289 = vunpack.c.l.b16 %v252
        %v290 = vunpack.c.l.b16 %v253
        %v291 = vunpack.c.l.b16 %v254
        %v292 = vpack.c.b16 %v277, %v276
        %v293 = vpack.c.b16 %v279, %v278
        %v294 = vpack.c.b16 %v281, %v280
        %v295 = vpack.c.b16 %v283, %v282
        %v296 = vpack.c.b16 %v285, %v284
        %v297 = vpack.c.b16 %v287, %v286
        %v298 = vpack.c.b16 %v289, %v288
        %v299 = vpack.c.b16 %v291, %v290
        %308 = vmatprep.subr.bf16.mxu0 0
        %309 = vmatpush1.bf16.msra.mxu0 %v299
        %310 = vmatprep.subr.bf16.mxu0 0
        %311 = vmatpush1.bf16.msra.mxu0 %v298
        %312 = vmatprep.subr.bf16.mxu0 0
        %313 = vmatpush1.bf16.msra.mxu0 %v297
        %314 = vmatprep.subr.bf16.mxu0 0
        %315 = vmatpush1.bf16.msra.mxu0 %v296
        %316 = vmatprep.subr.bf16.mxu0 0
        %317 = vmatpush1.bf16.msra.mxu0 %v295
        %318 = vmatprep.subr.bf16.mxu0 0
        %319 = vmatpush1.bf16.msra.mxu0 %v294
        %320 = vmatprep.subr.bf16.mxu0 0
        %321 = vmatpush1.bf16.msra.mxu0 %v293
        %322 = vmatprep.subr.bf16.mxu0 0
        %323 = vmatpush1.bf16.msra.mxu0 %v292
        %324 = vmatprep.subr.bf16.mxu0 0
        %325 = vmatpush2.bf16.msra.mxu0 0
        %326 = vmatprep.subr.bf16.mxu0 0
        %327 = vmatpush2.bf16.msra.mxu0 0
        %328 = vmatprep.subr.bf16.mxu0 0
        %329 = vmatpush2.bf16.msra.mxu0 0
        %330 = vmatprep.subr.bf16.mxu0 0
        %331 = vmatpush2.bf16.msra.mxu0 0
        %332 = vmatprep.subr.bf16.mxu0 0
        %333 = vmatpush2.bf16.msra.mxu0 0
        %334 = vmatprep.subr.bf16.mxu0 0
        %335 = vmatpush2.bf16.msra.mxu0 0
        %336 = vmatprep.subr.bf16.mxu0 0
        %337 = vmatpush2.bf16.msra.mxu0 0
        %338 = vmatprep.subr.bf16.mxu0 0
        %339 = vmatpush2.bf16.msra.mxu0 0
        %340 = vmatprep.mubr.bf16.mxu0 0
        %341 = vmatmul.mubr.bf16.gmra.mxu0 %v237
        %v342 = vpop.f32.mrf.mxu0
        %v343 = vadd.f32 %v259, %v342
        %v344 = vpop.f32.mrf.mxu0
        %v345 = vpop.f32.mrf.mxu0
        %v346 = vadd.f32 %v259, %v345
        %v347 = vpop.f32.mrf.mxu0
        %348 = vmatprep.mubr.bf16.mxu0 0
        %349 = vmatmul.mubr.bf16.gmra.mxu0 %v238
        %v350 = vpop.f32.mrf.mxu0
        %v351 = vadd.f32 %v259, %v350
        %v352 = vpop.f32.mrf.mxu0
        %v353 = vpop.f32.mrf.mxu0
        %v354 = vadd.f32 %v259, %v353
        %v355 = vpop.f32.mrf.mxu0
        %356 = vdwg.mxu0
        %v357 = vxor.u32 %v343, 2147483648
        %v358 = vxor.u32 %v346, 2147483648
        %v359 = vxor.u32 %v351, 2147483648
        %v360 = vxor.u32 %v354, 2147483648
        %v361 = vmul.f32 %v357, 1.442695
        %v362 = vpow.pop %v361
        %v363 = vmul.f32 %v358, 1.442695
        %v364 = vpow.pop %v363
        %v365 = vmul.f32 %v359, 1.442695
        %v366 = vpow.pop %v365
        %v367 = vmul.f32 %v360, 1.442695
        %v368 = vpow.pop %v367
        %v369 = vadd.f32 %v362, 1.0
        %v370 = vadd.f32 %v364, 1.0
        %v371 = vadd.f32 %v366, 1.0
        %v372 = vadd.f32 %v368, 1.0
        %v373 = vrcp.pop %v369
        %v374 = vmul.f32 1.0, %v373
        %v375 = vrcp.pop %v370
        %v376 = vmul.f32 1.0, %v375
        %v377 = vrcp.pop %v371
        %v378 = vmul.f32 1.0, %v377
        %v379 = vrcp.pop %v372
        %v380 = vmul.f32 1.0, %v379
        %v381 = vmul.f32 %v343, %v374
        %v382 = vmul.f32 %v346, %v376
        %v383 = vmul.f32 %v351, %v378
        %v384 = vmul.f32 %v354, %v380
        %v385 = vadd.f32 %v233, %v381
        %v386 = vadd.f32 %v234, %v382
        %v387 = vadd.f32 %v235, %v383
        %v388 = vadd.f32 %v236, %v384
        %389 = vadd.xlane.f32.xlu0 %v385
        %v390 = vpop.xlane.xlu0 %389
        %391 = vadd.xlane.f32.xlu0 %v386
        %v392 = vpop.xlane.xlu0 %391
        %393 = vadd.xlane.f32.xlu0 %v387
        %v394 = vpop.xlane.xlu0 %393
        %395 = vadd.xlane.f32.xlu0 %v388
        %v396 = vpop.xlane.xlu0 %395
        %v397 = vmul.f32 %v390, 0.0078125
        %v398 = vmul.f32 %v392, 0.0078125
        %v399 = vmul.f32 %v394, 0.0078125
        %v400 = vmul.f32 %v396, 0.0078125
        %v401 = vmul.f32 %v385, %v385
        %v402 = vmul.f32 %v386, %v386
        %v403 = vmul.f32 %v387, %v387
        %v404 = vmul.f32 %v388, %v388
        %405 = vadd.xlane.f32.xlu0 %v401
        %v406 = vpop.xlane.xlu0 %405
        %407 = vadd.xlane.f32.xlu0 %v402
        %v408 = vpop.xlane.xlu0 %407
        %409 = vadd.xlane.f32.xlu0 %v403
        %v410 = vpop.xlane.xlu0 %409
        %411 = vadd.xlane.f32.xlu0 %v404
        %v412 = vpop.xlane.xlu0 %411
        %v413 = vmul.f32 %v406, 0.0078125
        %v414 = vmul.f32 %v408, 0.0078125
        %v415 = vmul.f32 %v410, 0.0078125
        %v416 = vmul.f32 %v412, 0.0078125
        %v417 = vmul.f32 %v397, %v397
        %v418 = vmul.f32 %v398, %v398
        %v419 = vmul.f32 %v399, %v399
        %v420 = vmul.f32 %v400, %v400
        %v421 = vsub.f32 %v413, %v417
        %v422 = vsub.f32 %v414, %v418
        %v423 = vsub.f32 %v415, %v419
        %v424 = vsub.f32 %v416, %v420
        %v425 = vsub.f32 %v385, %v397
        %v426 = vsub.f32 %v386, %v398
        %v427 = vsub.f32 %v387, %v399
        %v428 = vsub.f32 %v388, %v400
        %v429 = vadd.f32 %v421, 1e-05
        %v430 = vadd.f32 %v422, 1e-05
        %v431 = vadd.f32 %v423, 1e-05
        %v432 = vadd.f32 %v424, 1e-05
        %v433 = vrsqrt.pop %v429
        %v434 = vrsqrt.pop %v430
        %v435 = vrsqrt.pop %v431
        %v436 = vrsqrt.pop %v432
        %v437 = vmul.f32 %v425, %v433
        %v438 = vmul.f32 %v426, %v434
        %v439 = vmul.f32 %v427, %v435
        %v440 = vmul.f32 %v428, %v436
        %v441 = vld [vmem:[#allocation7 + $0x1] sm:$0x1]
        %v442 = vlaneseq
        %v443 = vshrl.u32 %v442, 7
        %v444 = vsub.s32 0, %v443
        %v445 = vrot.slane %v441, %v444
        %v446 = vmul.f32 %v437, %v445
        %v447 = vmul.f32 %v438, %v445
        %v448 = vmul.f32 %v439, %v445
        %v449 = vmul.f32 %v440, %v445
        %v450 = vld [vmem:[#allocation7 + $0x2] sm:$0x1]
        %v451 = vlaneseq
        %v452 = vshrl.u32 %v451, 7
        %v453 = vsub.s32 0, %v452
        %v454 = vrot.slane %v450, %v453
        %v455 = vadd.f32 %v446, %v454
        %v456 = vadd.f32 %v447, %v454
        %v457 = vadd.f32 %v448, %v454
        %v458 = vadd.f32 %v449, %v454
        %459 = vst [vmem:[%s221] sm:$0xff] %v455
        %460 = vst [vmem:[%s221 + $0x8] sm:$0xff] %v456
        %461 = vst [vmem:[%s221 + $0x10] sm:$0xff] %v457
        %462 = vst [vmem:[%s221 + $0x18] sm:$0xff] %v458
        %s463 = sand.u32 %s97, 1
        %s464 = scalar_lea.sflag [#allocation4], %s463
        %s465 = sand.u32 %s97, 1
        %s466 = smul.addr %s465, 32
        %s467 = scalar_lea.vmem [#allocation8], %s466
        // Predicated region
        $region45: #{tpu_custom_call.1} parent=31 // pred_check
          %p468 = pneg %p107
        $region46: #{tpu_custom_call.1} parent=31 // pred_check_branch
          %470 = sbr.rel (%p468) target = $region48
        $region47: #{tpu_custom_call.1} parent=31 // pred_region
          %s471 = smul.u32 4, %s21
          %s472 = ssub.s32 7, %s471
          %p473 = scmp.lt.s32.totalorder %s472, 4
          %s474 = scalar_select %p473, %s472, 4
          %s475 = smul.u32 128, %s474
          %s477 = ssub.s32 512, %s475
          %478 = vsyncadd %s464, %s477
          %p479 = scmp.ne.s32.totalorder 0, %s475
          %s480 = smul.addr %s471, 128
          %s481 = scalar_lea.hbm %s3, %s480
          %s482 = smul.u32 8, %s474
          %s483 = sshll.u32 %s467, 4
          %s484 = int_to_ptr.vmem [resolvable:$true] %s483
          %s485 = sshll.u32 %s482, 4
          %489 = dma.vmem_to_hbm [thread:$0]  (%p479), %s484, %s485, %s481, %s464, 128, 128, 8
        $region48: #{tpu_custom_call.1} parent=31 // pred_fallthru
          _
      $region32: #{tpu_custom_call.1} parent=5 // pred_fallthru
        _
      %p490 = scmp.le.s32.totalorder 2, %s16
      // Predicated region
      $region49: #{tpu_custom_call.1} parent=5 // pred_check
        %p491 = pneg %p490
      $region50: #{tpu_custom_call.1} parent=5 // pred_check_branch
        %493 = sbr.rel (%p491) target = $region52
      $region51: #{tpu_custom_call.1} parent=5 // pred_region
        %s494 = ssub.s32 %s16, 2
        // Predicated region
        $region53: #{tpu_custom_call.1} parent=51 // pred_check
          %p495 = pneg %p113
        $region54: #{tpu_custom_call.1} parent=51 // pred_check_branch
          %497 = sbr.rel (%p495) target = $region56
        $region55: #{tpu_custom_call.1} parent=51 // pred_region
          %s498 = sand.u32 %s98, 1
          %s499 = scalar_lea.sflag [#allocation4], %s498
          %s500 = sand.u32 %s98, 1
          %s501 = smul.addr %s500, 32
          %s502 = scalar_lea.vmem [#allocation8], %s501
          %503 = dma.done %s499, 512
        $region56: #{tpu_custom_call.1} parent=51 // pred_fallthru
          _
      $region52: #{tpu_custom_call.1} parent=5 // pred_fallthru
        _
    $region6: #{tpu_custom_call.1} parent=1 // loop_footer
      %s20 = sadd.s32 1, %s16
    $region7: #{tpu_custom_call.1} parent=1 // loop_footer_branch
      %15 = sbr.rel target = $region3
    $region8: #{tpu_custom_call.1} parent=1 // loop_exit
      _
    %504 = vsyncpa [#allocation3], 1
    %s505 = scalar_lea.sflag [#allocation3], 1
    %506 = vsyncpa %s505, 1
    %507 = vsyncpa [#allocation6], 1
    %508 = vsyncpa [#allocation4], 1
    %s509 = scalar_lea.sflag [#allocation4], 1
    %510 = vsyncpa %s509, 1

</llo_original>
